<compile_context>
chip_gen: v6e
topology: v6e:2x2x1
jax: 0.10.0
libtpu: 0.0.40
codegen_flags: <defaults>
</compile_context>

<pallas_src>
import functools

import jax
import jax.numpy as jnp
from jax.experimental import pallas as pl
from jax.experimental.pallas import tpu as pltpu


def _round_up(x, m):
    return (x + m - 1) // m * m


@functools.lru_cache(maxsize=1)
def _vmem_cap_bytes():
    """Usable VMEM budget: ~7/8 of physical, capped at 100 MiB (v5e/v6e)."""
    phys = 64 << 20  # conservative default (v7x per-TensorCore VMEM)
    try:
        info = pltpu.get_tpu_info()
        phys = int(getattr(info, "vmem_capacity_bytes", phys))
    except Exception:
        pass
    return min(phys * 7 // 8, 100 << 20)


def _pick_tn(n, want_tn):
    """Largest lane tile (multiple of 128, <= want_tn) with small N padding."""
    best = 128
    hi = min(max(want_tn, 128), _round_up(n, 128))
    for t in range(128, hi + 1, 128):
        waste = _round_up(n, t) - n
        if waste <= max(128, n // 8):
            best = t
    return best


def _pick_tk(k, want_tk):
    """Largest K tile <= want_tk dividing K exactly (prefer 256-multiples)."""
    if k <= want_tk:
        return k
    for step in (256, 128):
        t = (want_tk // step) * step
        while t >= step:
            if k % t == 0:
                return t
            t -= step
    return k  # single full-K block (always a legal block shape)


def _matmul_kernel_acc(x_ref, w_ref, o_ref, acc_ref, *, compute_dtype):
    """Generic path: f32 VMEM accumulator, cast to o_ref.dtype at the end."""
    @pl.when(pl.program_id(2) == 0)
    def _():
        acc_ref[...] = jnp.zeros_like(acc_ref)

    acc_ref[...] += jnp.dot(
        x_ref[...].astype(compute_dtype), w_ref[...],
        preferred_element_type=jnp.float32)

    @pl.when(pl.program_id(2) == pl.num_programs(2) - 1)
    def _():
        o_ref[...] = acc_ref[...].astype(o_ref.dtype)


def _matmul_kernel_f32_out(x_ref, w_ref, o_ref, *, compute_dtype):
    """f32 output: accumulate directly into the VMEM-resident output block."""
    @pl.when(pl.program_id(2) == 0)
    def _():
        o_ref[...] = jnp.zeros_like(o_ref)

    o_ref[...] += jnp.dot(
        x_ref[...].astype(compute_dtype), w_ref[...],
        preferred_element_type=jnp.float32)


@functools.partial(jax.jit, static_argnames=("n_out", "tile_m", "tile_n", "tile_k"))
def _tp_linear1_call(x, w_kn, *, n_out, tile_m, tile_n, tile_k):
    """x: (B, S, K) activations; w_kn: (K, Np) pre-transposed, padded weight."""
    B, S, K = x.shape
    Kw, Np = w_kn.shape
    assert Kw == K and Np % tile_n == 0 and K % tile_k == 0
    M = B * S
    out_dtype = x.dtype
    compute_dtype = w_kn.dtype

    x2d = x.reshape(M, K)

    tm = min(M, tile_m)
    tn = tile_n
    tk = tile_k

    # v7x shards "parallel" grid axes across two TensorCores: if decode-sized M
    # leaves a single (M, N) block, split N so both cores get work.
    if pl.cdiv(M, tm) * (Np // tn) < 2:
        for t in range(tn - 128, 127, -128):
            if Np % t == 0:
                tn = t
                break

    x_bytes = jnp.dtype(x2d.dtype).itemsize
    w_bytes = jnp.dtype(compute_dtype).itemsize
    o_bytes = jnp.dtype(out_dtype).itemsize
    direct_f32_out = out_dtype == jnp.float32

    def footprint(tm_):
        f = 2 * (tm_ * tk * x_bytes + tk * tn * w_bytes) + 2 * tm_ * tn * o_bytes
        if not direct_f32_out:
            f += tm_ * tn * 4
        return f

    # Clamp the tiles (not just the limit) so the footprint fits the budget.
    cap = _vmem_cap_bytes()
    while footprint(tm) > cap and tm > 8:
        tm = max(8, _round_up(tm // 2, 8))
    vmem_limit = int(min(max(2 * footprint(tm), 16 << 20), cap))
    if footprint(tm) > vmem_limit:  # pathological (e.g. full-K fallback)
        vmem_limit = int(footprint(tm) + (4 << 20))

    m_blocks = pl.cdiv(M, tm)
    n_blocks = Np // tn
    k_blocks = K // tk
    grid = (m_blocks, n_blocks, k_blocks)

    # bytes_accessed accounts for re-streaming: the weight is read m_blocks
    # times, the activations n_blocks times.
    cost = pl.CostEstimate(
        flops=2 * M * Np * K,
        transcendentals=0,
        bytes_accessed=(M * K * x_bytes * n_blocks
                        + K * Np * w_bytes * m_blocks
                        + M * Np * o_bytes),
    )

    if direct_f32_out:
        kernel = functools.partial(_matmul_kernel_f32_out,
                                   compute_dtype=compute_dtype)
        scratch = []
    else:
        kernel = functools.partial(_matmul_kernel_acc,
                                   compute_dtype=compute_dtype)
        scratch = [pltpu.VMEM((tm, tn), jnp.float32)]

    out2d = pl.pallas_call(
        kernel,
        out_shape=jax.ShapeDtypeStruct((M, Np), out_dtype),
        grid_spec=pltpu.PrefetchScalarGridSpec(
            num_scalar_prefetch=0,
            grid=grid,
            in_specs=[
                pl.BlockSpec((tm, tk), lambda i, j, k: (i, k)),
                pl.BlockSpec((tk, tn), lambda i, j, k: (k, j)),
            ],
            out_specs=pl.BlockSpec((tm, tn), lambda i, j, k: (i, j)),
            scratch_shapes=scratch,
        ),
        compiler_params=pltpu.CompilerParams(
            dimension_semantics=("parallel", "parallel", "arbitrary"),
            vmem_limit_bytes=vmem_limit,
        ),
        cost_estimate=cost,
    )(x2d, w_kn)

    if Np != n_out:
        out2d = out2d[:, :n_out]
    return out2d.reshape(B, S, n_out)


class TPLinear1:
    """Pallas TPU port of TP_Linear1: forward(x) = x @ W_shard^T (no bias).

    All weight-side preprocessing (rank slice, bf16 cast, transpose to (K, N),
    lane padding to a tile_n multiple) happens exactly once here — never per
    forward call.
    """

    def __init__(self, full_weight, rank, tp_size=2, *, use_bf16=True,
                 tile_m=512, tile_n=512, tile_k=None):
        out_features, in_features = full_weight.shape
        del in_features
        self.per_rank_size = out_features // tp_size
        lo = rank * self.per_rank_size
        w_shard = full_weight[lo:lo + self.per_rank_size]   # (N, K) native layout
        # TODO(synk): the nn.Linear bias flag is falsy on this path, so there is
        # no bias slice/add; F.apply's backward all_reduce is backward-only.
        n, k = w_shard.shape
        compute_dtype = jnp.bfloat16 if use_bf16 else w_shard.dtype

        self.n_out = n
        self.tile_m = tile_m
        self.tile_n = _pick_tn(n, tile_n)
        want_tk = tile_k if tile_k is not None else (
            2048 if jnp.dtype(compute_dtype).itemsize <= 2 else 1024)
        self.tile_k = _pick_tk(k, want_tk)

        n_pad = _round_up(n, self.tile_n) - n
        w_kn = jnp.asarray(w_shard, dtype=compute_dtype).T   # (K, N), MXU-friendly
        if n_pad:
            w_kn = jnp.pad(w_kn, ((0, 0), (0, n_pad)))
        self.w_kn = jax.device_put(w_kn)

    def __call__(self, x):
        return _tp_linear1_call(
            x, self.w_kn,
            n_out=self.n_out,
            tile_m=self.tile_m, tile_n=self.tile_n, tile_k=self.tile_k)


if __name__ == "__main__":
    # Small shapes consistent with the module:
    #   full linear: in_features=32, out_features=64 -> per_rank_size=32
    #   input: (batch=2, seq=8, in_features=32)
    batch, seq, in_features, out_features = 2, 8, 32, 64
    tp_size = 2
    rank = 0  # simulated dist.get_group_rank(tp_group, dist.get_rank())

    key = jax.random.PRNGKey(0)
    kx, kw = jax.random.split(key)
    x = jax.random.normal(kx, (batch, seq, in_features), dtype=jnp.float32)
    w_full = jax.random.normal(kw, (out_features, in_features), dtype=jnp.float32)

    per = out_features // tp_size
    w_shard = w_full[rank * per:(rank + 1) * per]
    ref_f32 = x @ w_shard.T

    # f32-operand path: tight check against the plain JAX reference.
    layer_f32 = TPLinear1(w_full, rank, tp_size, use_bf16=False)
    out_f32 = layer_f32(x)
    jax.block_until_ready(out_f32)
    assert out_f32.shape == (batch, seq, per)
    assert jnp.allclose(out_f32, ref_f32, atol=1e-5, rtol=1e-5)

    # Default bf16-weight path (x cast to bf16 inside the kernel): compare
    # against a same-precision reference (tight) and f32 reference (loose).
    layer_bf16 = TPLinear1(w_full, rank, tp_size)
    out_bf16 = layer_bf16(x)
    jax.block_until_ready(out_bf16)
    ref_bf16 = jnp.dot(
        x.reshape(-1, in_features).astype(jnp.bfloat16),
        w_shard.T.astype(jnp.bfloat16),
        preferred_element_type=jnp.float32,
    ).reshape(batch, seq, per)
    assert out_bf16.shape == (batch, seq, per)
    assert jnp.allclose(out_bf16, ref_bf16, atol=1e-3, rtol=1e-3)
    assert jnp.allclose(out_bf16, ref_f32, atol=2e-1, rtol=5e-2)

    print("KERNEL_OK")
</pallas_src>

<mosaic_0001>
module attributes {stable_mosaic.version = 11 : i64} {
  func.func @_matmul_kernel_f32_out(%arg0: i32, %arg1: i32, %arg2: i32, %arg3: memref<16x32xf32, #tpu.memory_space<vmem>>, %arg4: memref<32x128xf32, #tpu.memory_space<vmem>>, %arg5: memref<16x128xf32, #tpu.memory_space<vmem>>) attributes {dimension_semantics = [#tpu.dimension_semantics<parallel>, #tpu.dimension_semantics<parallel>, #tpu.dimension_semantics<arbitrary>], iteration_bounds = array<i64: 1, 1, 1>, scalar_prefetch = 0 : i64, scratch_operands = 0 : i64, tpu.core_type = #tpu.core_type<tc>, window_params = [{transform_indices = @transform_0, window_bounds = array<i64: 16, 32>}, {transform_indices = @transform_1, window_bounds = array<i64: 32, 128>}, {transform_indices = @transform_2, window_bounds = array<i64: 16, 128>}]} {
    %c0_i32 = arith.constant 0 : i32
    %0 = arith.cmpi eq, %arg2, %c0_i32 : i32
    %1 = arith.extui %0 : i1 to i32
    %c0_i32_0 = arith.constant 0 : i32
    %2 = arith.cmpi ne, %1, %c0_i32_0 : i32
    scf.if %2 {
      %cst_8 = arith.constant 0.000000e+00 : f32
      %9 = vector.broadcast %cst_8 : f32 to vector<16x128xf32>
      %c0_9 = arith.constant 0 : index
      %c0_10 = arith.constant 0 : index
      %10 = vector.load %arg5[%c0_9, %c0_10] : memref<16x128xf32, #tpu.memory_space<vmem>>, vector<16x128xf32>
      tpu.vector_store %arg5[%c0_9, %c0_10], %9 {strides = array<i32>} : memref<16x128xf32, #tpu.memory_space<vmem>>, vector<16x128xf32>,
    } else {
    }
    %c0 = arith.constant 0 : index
    %c0_1 = arith.constant 0 : index
    %3 = vector.load %arg5[%c0, %c0_1] : memref<16x128xf32, #tpu.memory_space<vmem>>, vector<16x128xf32>
    %c0_2 = arith.constant 0 : index
    %c0_3 = arith.constant 0 : index
    %4 = vector.load %arg3[%c0_2, %c0_3] : memref<16x32xf32, #tpu.memory_space<vmem>>, vector<16x32xf32>
    %c0_4 = arith.constant 0 : index
    %c0_5 = arith.constant 0 : index
    %5 = vector.load %arg4[%c0_4, %c0_5] : memref<32x128xf32, #tpu.memory_space<vmem>>, vector<32x128xf32>
    %cst = arith.constant dense<0.000000e+00> : vector<16x128xf32>
    %6 = tpu.matmul %4, %5, %cst {dimension_numbers = #tpu.dot_dimension_numbers<[1], [0], [0], [1], [0, 0, 1, 1], [], []>} : vector<16x32xf32>, vector<32x128xf32>, vector<16x128xf32> -> vector<16x128xf32>
    %7 = arith.addf %3, %6 : vector<16x128xf32>
    %c0_6 = arith.constant 0 : index
    %c0_7 = arith.constant 0 : index
    %8 = vector.load %arg5[%c0_6, %c0_7] : memref<16x128xf32, #tpu.memory_space<vmem>>, vector<16x128xf32>
    tpu.vector_store %arg5[%c0_6, %c0_7], %7 {strides = array<i32>} : memref<16x128xf32, #tpu.memory_space<vmem>>, vector<16x128xf32>,
    return
  }
  func.func @transform_0(%arg0: i32, %arg1: i32, %arg2: i32) -> (i32, i32) {
    %c0_i32 = arith.constant 0 : i32
    return %arg0, %arg2 : i32, i32
  }
  func.func @transform_1(%arg0: i32, %arg1: i32, %arg2: i32) -> (i32, i32) {
    %c0_i32 = arith.constant 0 : i32
    return %arg2, %arg1 : i32, i32
  }
  func.func @transform_2(%arg0: i32, %arg1: i32, %arg2: i32) -> (i32, i32) {
    %c0_i32 = arith.constant 0 : i32
    return %arg0, %arg1 : i32, i32
  }
}

</mosaic_0001>

<llo_original>
// kernel: _tp_linear1_call.1
$region0: #{_tp_linear1_call.1}
  #allocation0 [shape = 'u32[]', space=smem, size = 0x4, offset = 0x4, fixed_abs, tag = 'smem constant byte address 0x4 - core index']
  #allocation1 [shape = 'u32[144,128]{1,0:T(1,128)}', space=vmem, size = 0x12000, scoped, tag = 'internal scratch']
  %s0 = inlined_call_operand.hbm [shape: f32[16,32], index: 0, kind: input, shape index: {}]
  %s1 = inlined_call_operand.hbm [shape: f32[32,128], index: 1, kind: input, shape index: {}]
  %s2 = inlined_call_operand.vmem [shape: f32[16,128], index: 2, kind: output, shape index: {}]
  %s3 = sld [smem:[#allocation0]]
  $region30: #{_tp_linear1_call.1} parent=0
    _
  %s5 = ssub.s32 1, %s3
  %s6 = scalar_select 0, %s5, %s3
  $region1: #{_tp_linear1_call.1} parent=0
    #allocation2 [shape = 'u8[8192]{0}', space=vmem, size = 0x2000, scoped, tag = 'input window, operand 0, single buffered']
    #allocation3 [shape = 's32[1]{0}', space=sflag, size = 0x4, scoped, tag = 'scoped memory for _tp_linear1_call.1']
    #allocation4 [shape = 'u8[16384]{0}', space=vmem, size = 0x4000, scoped, tag = 'input window, operand 1, single buffered']
    #allocation5 [shape = 's32[1]{0}', space=sflag, size = 0x4, scoped, tag = 'scoped memory for _tp_linear1_call.1']
    %7 = vsyncpa [#allocation3], 0
    %8 = vsyncpa [#allocation5], 0
    // Predicated region
    $region2: #{_tp_linear1_call.1} parent=1 // pred_check
      _
    $region3: #{_tp_linear1_call.1} parent=1 // pred_check_branch
      %10 = sbr.rel (0) target = $region5
    $region4: #{_tp_linear1_call.1} parent=1 // pred_region
      %s12 = ssub.s32 256, 256
      %13 = vsyncadd [#allocation3], %s12
      %s14 = sshll.u32 [#allocation2], 4
      %s15 = int_to_ptr.vmem [resolvable:$true] %s14
      %20 = dma.hbm_to_vmem [thread:$0]  %s0, 256, %s15, [#allocation3], 128, 128, 8
    $region5: #{_tp_linear1_call.1} parent=1 // pred_fallthru
      _
    // Predicated region
    $region6: #{_tp_linear1_call.1} parent=1 // pred_check
      _
    $region7: #{_tp_linear1_call.1} parent=1 // pred_check_branch
      %22 = sbr.rel (0) target = $region9
    $region8: #{_tp_linear1_call.1} parent=1 // pred_region
      %s24 = ssub.s32 512, 512
      %25 = vsyncadd [#allocation5], %s24
      %s26 = sshll.u32 [#allocation4], 4
      %s27 = int_to_ptr.vmem [resolvable:$true] %s26
      %32 = dma.hbm_to_vmem [thread:$0]  %s1, 512, %s27, [#allocation5], 128, 128, 8
    $region9: #{_tp_linear1_call.1} parent=1 // pred_fallthru
      _
    // Predicated region
    $region10: #{_tp_linear1_call.1} parent=1 // pred_check
      _
    $region11: #{_tp_linear1_call.1} parent=1 // pred_check_branch
      %34 = sbr.rel (0) target = $region13
    $region12: #{_tp_linear1_call.1} parent=1 // pred_region
      %35 = dma.done [#allocation3], 256
    $region13: #{_tp_linear1_call.1} parent=1 // pred_fallthru
      _
    // Predicated region
    $region14: #{_tp_linear1_call.1} parent=1 // pred_check
      _
    $region15: #{_tp_linear1_call.1} parent=1 // pred_check_branch
      %37 = sbr.rel (0) target = $region17
    $region16: #{_tp_linear1_call.1} parent=1 // pred_region
      %38 = dma.done [#allocation5], 512
    $region17: #{_tp_linear1_call.1} parent=1 // pred_fallthru
      _
    %p39 = scmp.eq.s32.totalorder 0, 0
    // Predicated region
    $region18: #{_tp_linear1_call.1} parent=1 // pred_check
      %p40 = pneg %p39
    $region19: #{_tp_linear1_call.1} parent=1 // pred_check_branch
      %42 = sbr.rel (%p40) target = $region21
    $region20: #{_tp_linear1_call.1} parent=1 // pred_region
      %43 = vst [vmem:[%s2] sm:$0xff] 0.0
      %44 = vst [vmem:[%s2 + $0x8] sm:$0xff] 0.0
    $region21: #{_tp_linear1_call.1} parent=1 // pred_fallthru
      _
    %v45 = vld [vmem:[%s2] sm:$0xff]
    %v46 = vld [vmem:[%s2 + $0x8] sm:$0xff]
    %v47 = vld [vmem:[#allocation2] sm:$0xff]
    %v48 = vld [vmem:[#allocation2 + $0x8] sm:$0xff]
    %v49 = vld [vmem:[#allocation4] sm:$0xff]
    %v50 = vld [vmem:[#allocation4 + $0x8] sm:$0xff]
    %v51 = vld [vmem:[#allocation4 + $0x10] sm:$0xff]
    %v52 = vld [vmem:[#allocation4 + $0x18] sm:$0xff]
    %vm53 = vcmask 261120
    %v55 = vsel %vm53, %v47, 0
    %v58 = vsel %vm53, %v48, 0
    %60 = vmatprep.subr.mxu0 0.0
    %61 = vmatpush1.msra.mxu0 0.0
    %62 = vmatprep.subr.mxu0 0.0
    %63 = vmatpush1.msra.mxu0 0.0
    %64 = vmatprep.subr.mxu0 0.0
    %65 = vmatpush1.msra.mxu0 0.0
    %66 = vmatprep.subr.mxu0 0.0
    %67 = vmatpush1.msra.mxu0 0.0
    %68 = vmatprep.subr.mxu0 0.0
    %69 = vmatpush1.msra.mxu0 0.0
    %70 = vmatprep.subr.mxu0 0.0
    %71 = vmatpush1.msra.mxu0 0.0
    %72 = vmatprep.subr.mxu0 0.0
    %73 = vmatpush1.msra.mxu0 0.0
    %74 = vmatprep.subr.mxu0 0.0
    %75 = vmatpush1.msra.mxu0 0.0
    %76 = vmatprep.subr.mxu0 0.0
    %77 = vmatpush1.msra.mxu0 0.0
    %78 = vmatprep.subr.mxu0 0.0
    %79 = vmatpush1.msra.mxu0 0.0
    %80 = vmatprep.subr.mxu0 0.0
    %81 = vmatpush1.msra.mxu0 0.0
    %82 = vmatprep.subr.mxu0 0.0
    %83 = vmatpush1.msra.mxu0 0.0
    %84 = vmatprep.subr.mxu0 0.0
    %85 = vmatpush1.msra.mxu0 %v52
    %86 = vmatprep.subr.mxu0 0.0
    %87 = vmatpush1.msra.mxu0 %v51
    %88 = vmatprep.subr.mxu0 0.0
    %89 = vmatpush1.msra.mxu0 %v50
    %90 = vmatprep.subr.mxu0 0.0
    %91 = vmatpush1.msra.mxu0 %v49
    %92 = vmatprep.subr.mxu0 0.0
    %93 = vmatpush2.msra.mxu0 0.0
    %94 = vmatprep.subr.mxu0 0.0
    %95 = vmatpush2.msra.mxu0 0.0
    %96 = vmatprep.subr.mxu0 0.0
    %97 = vmatpush2.msra.mxu0 0.0
    %98 = vmatprep.subr.mxu0 0.0
    %99 = vmatpush2.msra.mxu0 0.0
    %100 = vmatprep.subr.mxu0 0.0
    %101 = vmatpush2.msra.mxu0 0.0
    %102 = vmatprep.subr.mxu0 0.0
    %103 = vmatpush2.msra.mxu0 0.0
    %104 = vmatprep.subr.mxu0 0.0
    %105 = vmatpush2.msra.mxu0 0.0
    %106 = vmatprep.subr.mxu0 0.0
    %107 = vmatpush2.msra.mxu0 0.0
    %108 = vmatprep.subr.mxu0 0.0
    %109 = vmatpush2.msra.mxu0 0.0
    %110 = vmatprep.subr.mxu0 0.0
    %111 = vmatpush2.msra.mxu0 0.0
    %112 = vmatprep.subr.mxu0 0.0
    %113 = vmatpush2.msra.mxu0 0.0
    %114 = vmatprep.subr.mxu0 0.0
    %115 = vmatpush2.msra.mxu0 0.0
    %116 = vmatprep.subr.mxu0 0.0
    %117 = vmatpush2.msra.mxu0 0.0
    %118 = vmatprep.subr.mxu0 0.0
    %119 = vmatpush2.msra.mxu0 0.0
    %120 = vmatprep.subr.mxu0 0.0
    %121 = vmatpush2.msra.mxu0 0.0
    %122 = vmatprep.subr.mxu0 0.0
    %123 = vmatpush2.msra.mxu0 0.0
    %124 = vmatprep.mubr.f32.mxu0 0.0
    %125 = vmatmul.mubr.f32.gmra.mxu0 %v55
    %v126 = vpop.f32.mrf.mxu0
    %v127 = vadd.f32 0.0, %v126
    %v128 = vpop.f32.mrf.mxu0
    %129 = vmatprep.mubr.f32.mxu0 0.0
    %130 = vmatmul.mubr.f32.gmra.mxu0 %v58
    %v131 = vpop.f32.mrf.mxu0
    %v132 = vadd.f32 0.0, %v131
    %v133 = vpop.f32.mrf.mxu0
    %134 = vdwg.mxu0
    %v135 = vadd.f32 %v45, %v127
    %v136 = vadd.f32 %v46, %v132
    %137 = vst [vmem:[%s2] sm:$0xff] %v135
    %138 = vst [vmem:[%s2 + $0x8] sm:$0xff] %v136
    // Predicated region
    $region22: #{_tp_linear1_call.1} parent=1 // pred_check
      _
    $region23: #{_tp_linear1_call.1} parent=1 // pred_check_branch
      %140 = sbr.rel (0) target = $region25
    $region24: #{_tp_linear1_call.1} parent=1 // pred_region
      _
    $region25: #{_tp_linear1_call.1} parent=1 // pred_fallthru
      _
    // Predicated region
    $region26: #{_tp_linear1_call.1} parent=1 // pred_check
      _
    $region27: #{_tp_linear1_call.1} parent=1 // pred_check_branch
      %142 = sbr.rel (0) target = $region29
    $region28: #{_tp_linear1_call.1} parent=1 // pred_region
      _
    $region29: #{_tp_linear1_call.1} parent=1 // pred_fallthru
      _
    %143 = vsyncpa [#allocation3], 1
    %144 = vsyncpa [#allocation5], 1

</llo_original>
